<compile_context>
chip_gen: v7x
topology: tpu7x:2x2x1
jax: 0.10.0
libtpu: 0.0.40
codegen_flags: <defaults>
</compile_context>

<pallas_src>
import jax
import jax.numpy as jnp
from jax import lax
from jax.experimental import pallas as pl
from jax.experimental.pallas import tpu as pltpu

BETA = 0.95
THRESHOLD = 1.0
HIDDEN = 256
OUT_LANES = 128   # lane-dense output slab: lane 0 = spk2, lane 1 = mem2


# --------------------------------------------------------------------------- #
# Shared in-kernel math
# --------------------------------------------------------------------------- #
def _leaky_step(x, mem_prev, w1t, b1, w2, b2_scalar):
    """One Critic forward step. x:(B,D_in) mem_prev:(B,256) w1t:(D_in,256)
    b1:(1,256) w2:(1,256) b2_scalar: scalar. Returns (spk2, mem2, mem1)."""
    # fc1 on the MXU in natural (K, N) orientation, f32 accumulate.
    cur1 = jnp.dot(x, w1t, preferred_element_type=jnp.float32) + b1      # (B,256)

    # Leaky neuron 1 (reset-by-subtraction from previous membrane).
    mem1 = BETA * mem_prev + cur1 - jnp.where(mem_prev > THRESHOLD, THRESHOLD, 0.0)

    # fc2 as VPU select + XLU lane reduction: spk1 is binary, so
    # spk1 @ w2^T == sum over lanes of w2 where mem1 > threshold.
    masked_w2 = jnp.where(mem1 > THRESHOLD, w2, 0.0)                     # (B,256)
    cur2 = jnp.sum(masked_w2, axis=-1, keepdims=True) + b2_scalar        # (B,1)

    # Leaky neuron 2 (membrane zeroed by snntorch shape mismatch).
    mem2 = cur2
    spk2 = jnp.where(cur2 > THRESHOLD, 1.0, 0.0)
    return spk2, mem2, mem1


def _pack_out(spk2, mem2):
    """Pack (B,1) spk2 / mem2 into a lane-dense (B, OUT_LANES) slab:
    lane 0 = spk2, lane 1 = mem2, rest 0 (single unmasked store)."""
    b = spk2.shape[0]
    lane = lax.broadcasted_iota(jnp.int32, (b, OUT_LANES), 1)
    return jnp.where(lane == 0, spk2, jnp.where(lane == 1, mem2, 0.0))


# --------------------------------------------------------------------------- #
# Kernel 1: single forward call (matches Critic.forward exactly)
# --------------------------------------------------------------------------- #
def critic_kernel(x_ref, w1t_ref, b1_ref, w2_ref, b2_ref, mem0_ref, out_ref):
    spk2, mem2, _ = _leaky_step(
        x_ref[...], mem0_ref[...], w1t_ref[...], b1_ref[...], w2_ref[...],
        b2_ref[0, 0],                                  # scalar from SMEM
    )
    out_ref[...] = _pack_out(spk2, mem2)


# --------------------------------------------------------------------------- #
# Kernel 2: T timesteps fused into one pallas_call (grid over the step axis)
# --------------------------------------------------------------------------- #
def critic_steps_kernel(x_ref, w1t_ref, b1_ref, w2_ref, b2_ref, mem0_ref,
                        out_ref, mem_ref):
    @pl.when(pl.program_id(0) == 0)
    def _():
        mem_ref[...] = mem0_ref[...]                   # init carried membrane

    spk2, mem2, mem1 = _leaky_step(
        x_ref[...], mem_ref[...], w1t_ref[...], b1_ref[...], w2_ref[...],
        b2_ref[0, 0],
    )
    mem_ref[...] = mem1                                # carry neuron-1 membrane
    out_ref[...] = _pack_out(spk2, mem2)


# --------------------------------------------------------------------------- #
# Wrappers
# --------------------------------------------------------------------------- #
def _prep_params(w1, b1, w2, b2):
    w1t = w1.T                         # (D_in, 256) lane-dense, MXU (K, N)
    b1r = b1.reshape(1, HIDDEN)        # broadcast over batch in-kernel
    w2r = w2.reshape(1, HIDDEN)        # lane-dense (1, 256)
    b2r = b2.reshape(1, 1)             # true scalar -> SMEM
    return w1t, b1r, w2r, b2r


def critic_forward(x, w1, b1, w2, b2, mem0):
    """Single Critic.forward. x:(B,D_in) w1:(256,D_in) b1:(256,) w2:(1,256)
    b2:(1,) mem0:(B,256). Returns (spk2, mem2), both (B,1) float32."""
    B, d_in = x.shape
    w1t, b1r, w2r, b2r = _prep_params(w1, b1, w2, b2)

    vmem = pl.BlockSpec(memory_space=pltpu.MemorySpace.VMEM)
    smem = pl.BlockSpec(memory_space=pltpu.MemorySpace.SMEM)

    flops = 2 * B * d_in * HIDDEN + 6 * B * HIDDEN
    bytes_accessed = 4 * (x.size + w1t.size + b1r.size + w2r.size + 1
                          + mem0.size + B * OUT_LANES)

    out = pl.pallas_call(
        critic_kernel,
        out_shape=jax.ShapeDtypeStruct((B, OUT_LANES), jnp.float32),
        in_specs=[vmem, vmem, vmem, vmem, smem, vmem],
        out_specs=vmem,
        cost_estimate=pl.CostEstimate(
            flops=flops, transcendentals=0, bytes_accessed=bytes_accessed),
    )(x, w1t, b1r, w2r, b2r, mem0)

    return out[:, 0:1], out[:, 1:2]


def critic_forward_steps(xs, w1, b1, w2, b2, mem0):
    """T fused timesteps: one pallas_call, weights DMA'd once, membrane carried
    in VMEM scratch. xs:(T,B,D_in), mem0:(B,256) is the step-0 membrane.
    Returns (spk2, mem2) of shape (T,B,1) each.
    TODO(synk): carries mem1 -> next step's mem0 (standard snntorch rollout);
    the module's own forward leaves that carry to the caller."""
    T, B, d_in = xs.shape
    w1t, b1r, w2r, b2r = _prep_params(w1, b1, w2, b2)

    resident = lambda shape: pl.BlockSpec(shape, lambda t: (0, 0))
    smem = pl.BlockSpec(memory_space=pltpu.MemorySpace.SMEM)

    flops = T * (2 * B * d_in * HIDDEN + 6 * B * HIDDEN)
    bytes_accessed = 4 * (xs.size + w1t.size + b1r.size + w2r.size + 1
                          + mem0.size + T * B * OUT_LANES)

    out = pl.pallas_call(
        critic_steps_kernel,
        out_shape=jax.ShapeDtypeStruct((T, B, OUT_LANES), jnp.float32),
        grid=(T,),
        in_specs=[
            pl.BlockSpec((None, B, d_in), lambda t: (t, 0, 0)),   # per-step x
            resident((d_in, HIDDEN)),                              # w1t, DMA once
            resident((1, HIDDEN)),                                 # b1
            resident((1, HIDDEN)),                                 # w2
            smem,                                                  # b2 scalar
            resident((B, HIDDEN)),                                 # mem0
        ],
        out_specs=pl.BlockSpec((None, B, OUT_LANES), lambda t: (t, 0, 0)),
        scratch_shapes=[pltpu.VMEM((B, HIDDEN), jnp.float32)],     # carried mem1
        compiler_params=pltpu.CompilerParams(
            dimension_semantics=("arbitrary",)),   # sequential membrane carry
        cost_estimate=pl.CostEstimate(
            flops=flops, transcendentals=0, bytes_accessed=bytes_accessed),
    )(xs, w1t, b1r, w2r, b2r, mem0)

    return out[:, :, 0:1], out[:, :, 1:2]


# --------------------------------------------------------------------------- #
# Pure-JAX references
# --------------------------------------------------------------------------- #
def critic_reference(x, w1, b1, w2, b2, mem0):
    hp = jax.lax.Precision.HIGHEST
    cur1 = jnp.dot(x, w1.T, precision=hp) + b1
    mem1 = BETA * mem0 + cur1 - jnp.where(mem0 > THRESHOLD, THRESHOLD, 0.0)
    spk1 = (mem1 > THRESHOLD).astype(jnp.float32)
    cur2 = jnp.dot(spk1, w2.T, precision=hp) + b2
    mem2 = cur2
    spk2 = (cur2 > THRESHOLD).astype(jnp.float32)
    return spk2, mem2, mem1


def critic_reference_rollout(xs, w1, b1, w2, b2, mem0):
    mem = mem0
    spks, mems = [], []
    for t in range(xs.shape[0]):
        spk2, mem2, mem1 = critic_reference(xs[t], w1, b1, w2, b2, mem)
        spks.append(spk2)
        mems.append(mem2)
        mem = mem1
    return jnp.stack(spks), jnp.stack(mems)


# --------------------------------------------------------------------------- #
if __name__ == "__main__":
    B, D_IN, T = 2, 32, 8

    key = jax.random.PRNGKey(0)
    k1, k2, k3, k4, k5, k6 = jax.random.split(key, 6)

    # Deterministic PyTorch-Linear-style init: U(-1/sqrt(fan_in), 1/sqrt(fan_in))
    bound1 = 1.0 / (D_IN ** 0.5)
    w1 = jax.random.uniform(k1, (HIDDEN, D_IN), jnp.float32, -bound1, bound1)
    b1 = jax.random.uniform(k2, (HIDDEN,), jnp.float32, -bound1, bound1)
    bound2 = 1.0 / (HIDDEN ** 0.5)
    w2 = jax.random.uniform(k3, (1, HIDDEN), jnp.float32, -bound2, bound2)
    b2 = jax.random.uniform(k4, (1,), jnp.float32, -bound2, bound2)

    x = jax.random.normal(k5, (B, D_IN), jnp.float32)
    xs = jax.random.normal(k6, (T, B, D_IN), jnp.float32)
    # init_membranes() -> zeros(256); batched here as (B, 256)
    mem0 = jnp.zeros((B, HIDDEN), jnp.float32)

    # ---- single-call kernel (exact module forward) ----
    spk2, mem2 = critic_forward(x, w1, b1, w2, b2, mem0)
    jax.block_until_ready((spk2, mem2))

    assert spk2.shape == (B, 1) and mem2.shape == (B, 1)
    assert spk2.dtype == jnp.float32 and mem2.dtype == jnp.float32
    assert bool(jnp.all(jnp.isfinite(mem2)))
    assert bool(jnp.all((spk2 == 0.0) | (spk2 == 1.0)))

    spk2_ref, mem2_ref, _ = critic_reference(x, w1, b1, w2, b2, mem0)
    assert bool(jnp.allclose(mem2, mem2_ref, rtol=1e-4, atol=1e-4))
    assert bool(jnp.all(spk2 == spk2_ref))

    # ---- fused multi-timestep kernel (one launch, weights DMA'd once) ----
    spk_all, mem_all = critic_forward_steps(xs, w1, b1, w2, b2, mem0)
    jax.block_until_ready((spk_all, mem_all))

    assert spk_all.shape == (T, B, 1) and mem_all.shape == (T, B, 1)
    assert bool(jnp.all(jnp.isfinite(mem_all)))
    assert bool(jnp.all((spk_all == 0.0) | (spk_all == 1.0)))

    spk_all_ref, mem_all_ref = critic_reference_rollout(xs, w1, b1, w2, b2, mem0)
    assert bool(jnp.allclose(mem_all, mem_all_ref, rtol=1e-4, atol=1e-4))
    assert bool(jnp.all(spk_all == spk_all_ref))

    print("KERNEL_OK")
</pallas_src>

<mosaic_0001>
module attributes {stable_mosaic.version = 11 : i64} {
  func.func @critic_kernel(%arg0: memref<2x32xf32, #tpu.memory_space<vmem>>, %arg1: memref<32x256xf32, #tpu.memory_space<vmem>>, %arg2: memref<1x256xf32, #tpu.memory_space<vmem>>, %arg3: memref<1x256xf32, #tpu.memory_space<vmem>>, %arg4: memref<1x1xf32, #tpu.memory_space<smem>>, %arg5: memref<2x256xf32, #tpu.memory_space<vmem>>, %arg6: memref<2x128xf32, #tpu.memory_space<vmem>>) attributes {dimension_semantics = [], scalar_prefetch = 0 : i64, scratch_operands = 0 : i64, tpu.core_type = #tpu.core_type<tc>} {
    %c0 = arith.constant 0 : index
    %c0_0 = arith.constant 0 : index
    %0 = vector.load %arg0[%c0, %c0_0] : memref<2x32xf32, #tpu.memory_space<vmem>>, vector<2x32xf32>
    %c0_1 = arith.constant 0 : index
    %c0_2 = arith.constant 0 : index
    %1 = vector.load %arg5[%c0_1, %c0_2] : memref<2x256xf32, #tpu.memory_space<vmem>>, vector<2x256xf32>
    %c0_3 = arith.constant 0 : index
    %c0_4 = arith.constant 0 : index
    %2 = vector.load %arg1[%c0_3, %c0_4] : memref<32x256xf32, #tpu.memory_space<vmem>>, vector<32x256xf32>
    %c0_5 = arith.constant 0 : index
    %c0_6 = arith.constant 0 : index
    %3 = vector.load %arg2[%c0_5, %c0_6] : memref<1x256xf32, #tpu.memory_space<vmem>>, vector<1x256xf32>
    %c0_7 = arith.constant 0 : index
    %c0_8 = arith.constant 0 : index
    %4 = vector.load %arg3[%c0_7, %c0_8] : memref<1x256xf32, #tpu.memory_space<vmem>>, vector<1x256xf32>
    %c0_9 = arith.constant 0 : index
    %c0_10 = arith.constant 0 : index
    %5 = memref.load %arg4[%c0_9, %c0_10] : memref<1x1xf32, #tpu.memory_space<smem>>
    %cst = arith.constant dense<0.000000e+00> : vector<2x256xf32>
    %6 = tpu.matmul %0, %2, %cst {dimension_numbers = #tpu.dot_dimension_numbers<[1], [0], [0], [1], [0, 0, 1, 1], [], []>} : vector<2x32xf32>, vector<32x256xf32>, vector<2x256xf32> -> vector<2x256xf32>
    %7 = vector.broadcast %3 : vector<1x256xf32> to vector<2x256xf32>
    %8 = arith.addf %6, %7 : vector<2x256xf32>
    %cst_11 = arith.constant 0.949999988 : f32
    %9 = vector.broadcast %cst_11 : f32 to vector<2x256xf32>
    %10 = arith.mulf %9, %1 : vector<2x256xf32>
    %11 = arith.addf %10, %8 : vector<2x256xf32>
    %cst_12 = arith.constant 1.000000e+00 : f32
    %12 = vector.broadcast %cst_12 : f32 to vector<2x256xf32>
    %13 = arith.cmpf ogt, %1, %12 : vector<2x256xf32>
    %cst_13 = arith.constant 1.000000e+00 : f32
    %cst_14 = arith.constant 0.000000e+00 : f32
    %14 = vector.broadcast %cst_13 : f32 to vector<2x256xf32>
    %15 = vector.broadcast %cst_14 : f32 to vector<2x256xf32>
    %16 = arith.select %13, %14, %15 : vector<2x256xi1>, vector<2x256xf32>
    %17 = arith.subf %11, %16 : vector<2x256xf32>
    %cst_15 = arith.constant 1.000000e+00 : f32
    %18 = vector.broadcast %cst_15 : f32 to vector<2x256xf32>
    %19 = arith.cmpf ogt, %17, %18 : vector<2x256xf32>
    %cst_16 = arith.constant 0.000000e+00 : f32
    %20 = vector.shape_cast %4 : vector<1x256xf32> to vector<1x256xf32>
    %21 = vector.broadcast %20 : vector<1x256xf32> to vector<2x256xf32>
    %22 = vector.broadcast %cst_16 : f32 to vector<2x256xf32>
    %23 = arith.select %19, %21, %22 : vector<2x256xi1>, vector<2x256xf32>
    %cst_17 = arith.constant dense<0.000000e+00> : vector<2xf32>
    %24 = vector.multi_reduction <add>, %23, %cst_17 [1] : vector<2x256xf32> to vector<2xf32>
    %25 = vector.shape_cast %24 : vector<2xf32> to vector<2x1xf32>
    %26 = vector.broadcast %5 : f32 to vector<2x1xf32>
    %27 = arith.addf %25, %26 : vector<2x1xf32>
    %cst_18 = arith.constant 1.000000e+00 : f32
    %28 = vector.broadcast %cst_18 : f32 to vector<2x1xf32>
    %29 = arith.cmpf ogt, %27, %28 : vector<2x1xf32>
    %cst_19 = arith.constant 1.000000e+00 : f32
    %cst_20 = arith.constant 0.000000e+00 : f32
    %30 = vector.broadcast %cst_19 : f32 to vector<2x1xf32>
    %31 = vector.broadcast %cst_20 : f32 to vector<2x1xf32>
    %32 = arith.select %29, %30, %31 : vector<2x1xi1>, vector<2x1xf32>
    %33 = tpu.iota {dimensions = array<i32: 1>} : vector<2x128xi32>
    %c0_i32 = arith.constant 0 : i32
    %34 = vector.broadcast %c0_i32 : i32 to vector<2x128xi32>
    %35 = arith.cmpi eq, %33, %34 : vector<2x128xi32>
    %c1_i32 = arith.constant 1 : i32
    %36 = vector.broadcast %c1_i32 : i32 to vector<2x128xi32>
    %37 = arith.cmpi eq, %33, %36 : vector<2x128xi32>
    %cst_21 = arith.constant 0.000000e+00 : f32
    %38 = vector.shape_cast %27 : vector<2x1xf32> to vector<2x1xf32>
    %39 = vector.broadcast %38 : vector<2x1xf32> to vector<2x128xf32>
    %40 = vector.broadcast %cst_21 : f32 to vector<2x128xf32>
    %41 = arith.select %37, %39, %40 : vector<2x128xi1>, vector<2x128xf32>
    %42 = vector.shape_cast %32 : vector<2x1xf32> to vector<2x1xf32>
    %43 = vector.broadcast %42 : vector<2x1xf32> to vector<2x128xf32>
    %44 = arith.select %35, %43, %41 : vector<2x128xi1>, vector<2x128xf32>
    %c0_22 = arith.constant 0 : index
    %c0_23 = arith.constant 0 : index
    %45 = vector.load %arg6[%c0_22, %c0_23] : memref<2x128xf32, #tpu.memory_space<vmem>>, vector<2x128xf32>
    tpu.vector_store %arg6[%c0_22, %c0_23], %44 {strides = array<i32>} : memref<2x128xf32, #tpu.memory_space<vmem>>, vector<2x128xf32>,
    return
  }
}

</mosaic_0001>

<llo_original>
// kernel: tpu_custom_call.1
$region0: #{tpu_custom_call.1}
  #allocation0 [shape = 'u32[]', space=smem, size = 0x4, offset = 0x4, fixed_abs, tag = 'smem constant byte address 0x4 - core index']
  #allocation1 [shape = 'u32[144,128]{1,0:T(1,128)}', space=vmem, size = 0x12000, scoped, tag = 'internal scratch']
  #allocation2 [shape = 'f32[1,1]{1,0:T(1,128)S(6)}', space=smem, size = 0x200, scoped, tag = 'scoped memory for tpu_custom_call.1']
  %s0 = inlined_call_operand.vmem [shape: f32[2,32], index: 0, kind: input, shape index: {}]
  %s1 = inlined_call_operand.hbm [shape: f32[32,256], index: 1, kind: input, shape index: {}]
  %s2 = inlined_call_operand.vmem [shape: f32[1,256], index: 2, kind: input, shape index: {}]
  %s3 = inlined_call_operand.vmem [shape: f32[1,256], index: 3, kind: input, shape index: {}]
  %s4 = inlined_call_operand.<no memory space> [shape: f32[1,1], index: 4, kind: input, shape index: {}]
  %s5 = inlined_call_operand.vmem [shape: f32[2,256], index: 5, kind: input, shape index: {}]
  %s6 = inlined_call_operand.hbm [shape: f32[2,128], index: 6, kind: output, shape index: {}]
  %s7 = sld [smem:[#allocation0]]
  $region38: #{tpu_custom_call.1} parent=0
    _
  %s9 = ssub.s32 1, %s7
  %s10 = scalar_select 0, %s9, %s7
  %11 = sst [smem:[#allocation2]] %s4
  $region1: #{tpu_custom_call.1} parent=0
    #allocation3 [shape = 'u8[32768]{0}', space=vmem, size = 0x8000, scoped, tag = 'input window, operand 1, single buffered']
    #allocation4 [shape = 's32[1]{0}', space=sflag, size = 0x4, scoped, tag = 'scoped memory for tpu_custom_call.1']
    #allocation5 [shape = 's32[1]{0}', space=sflag, size = 0x4, scoped, tag = 'scoped memory for tpu_custom_call.1']
    #allocation6 [shape = 'u8[1024]{0}', space=vmem, size = 0x400, scoped, tag = 'output window, operand 0, single buffered']
    %12 = vsyncpa [#allocation4], 0
    %13 = vsyncpa [#allocation5], 0
    // Predicated region
    $region2: #{tpu_custom_call.1} parent=1 // pred_check
      _
    $region3: #{tpu_custom_call.1} parent=1 // pred_check_branch
      %15 = sbr.rel (0) target = $region5
    $region4: #{tpu_custom_call.1} parent=1 // pred_region
      _
    $region5: #{tpu_custom_call.1} parent=1 // pred_fallthru
      _
    // Predicated region
    $region6: #{tpu_custom_call.1} parent=1 // pred_check
      _
    $region7: #{tpu_custom_call.1} parent=1 // pred_check_branch
      %17 = sbr.rel (0) target = $region9
    $region8: #{tpu_custom_call.1} parent=1 // pred_region
      %s19 = ssub.s32 1024, 1024
      %20 = vsyncadd [#allocation4], %s19
      %s21 = sshll.u32 [#allocation3], 4
      %s22 = int_to_ptr.vmem [resolvable:$true] %s21
      %27 = dma.hbm_to_vmem [thread:$0]  %s1, 1024, %s22, [#allocation4], 256, 256, 16
    $region9: #{tpu_custom_call.1} parent=1 // pred_fallthru
      _
    // Predicated region
    $region10: #{tpu_custom_call.1} parent=1 // pred_check
      _
    $region11: #{tpu_custom_call.1} parent=1 // pred_check_branch
      %29 = sbr.rel (0) target = $region13
    $region12: #{tpu_custom_call.1} parent=1 // pred_region
      _
    $region13: #{tpu_custom_call.1} parent=1 // pred_fallthru
      _
    // Predicated region
    $region14: #{tpu_custom_call.1} parent=1 // pred_check
      _
    $region15: #{tpu_custom_call.1} parent=1 // pred_check_branch
      %31 = sbr.rel (0) target = $region17
    $region16: #{tpu_custom_call.1} parent=1 // pred_region
      _
    $region17: #{tpu_custom_call.1} parent=1 // pred_fallthru
      _
    // Predicated region
    $region18: #{tpu_custom_call.1} parent=1 // pred_check
      _
    $region19: #{tpu_custom_call.1} parent=1 // pred_check_branch
      %33 = sbr.rel (0) target = $region21
    $region20: #{tpu_custom_call.1} parent=1 // pred_region
      _
    $region21: #{tpu_custom_call.1} parent=1 // pred_fallthru
      _
    // Predicated region
    $region22: #{tpu_custom_call.1} parent=1 // pred_check
      _
    $region23: #{tpu_custom_call.1} parent=1 // pred_check_branch
      %35 = sbr.rel (0) target = $region25
    $region24: #{tpu_custom_call.1} parent=1 // pred_region
      _
    $region25: #{tpu_custom_call.1} parent=1 // pred_fallthru
      _
    // Predicated region
    $region26: #{tpu_custom_call.1} parent=1 // pred_check
      _
    $region27: #{tpu_custom_call.1} parent=1 // pred_check_branch
      %37 = sbr.rel (0) target = $region29
    $region28: #{tpu_custom_call.1} parent=1 // pred_region
      %38 = dma.done [#allocation4], 1024
    $region29: #{tpu_custom_call.1} parent=1 // pred_fallthru
      _
    %v39 = vld [vmem:[%s0] sm:$0x3]
    %v40 = vld [vmem:[%s5] sm:$0xf]
    %v41 = vld [vmem:[#allocation3] sm:$0xff]
    %v42 = vld [vmem:[#allocation3 + $0x8] sm:$0xff]
    %v43 = vld [vmem:[#allocation3 + $0x10] sm:$0xff]
    %v44 = vld [vmem:[#allocation3 + $0x18] sm:$0xff]
    %v45 = vld [vmem:[#allocation3 + $0x20] sm:$0xff]
    %v46 = vld [vmem:[#allocation3 + $0x28] sm:$0xff]
    %v47 = vld [vmem:[#allocation3 + $0x30] sm:$0xff]
    %v48 = vld [vmem:[#allocation3 + $0x38] sm:$0xff]
    %v49 = vld [vmem:[%s2] sm:$0x3]
    %v50 = vld [vmem:[%s3] sm:$0x3]
    %s51 = sld [smem:[#allocation2]]
    %v53 = vlaneseq
    %v54 = vshrl.u32 %v53, 7
    %v55 = vsub.s32 0, %v54
    %v56 = vrot.slane %v49, %v55
    %v57 = vlaneseq
    %v58 = vshrl.u32 %v57, 7
    %v59 = vsub.s32 1, %v58
    %v60 = vrot.slane %v49, %v59
    %vm63 = vcmask 261120
    %v65 = vsel %vm63, %v39, 0
    %67 = vmatprep.subr.mxu0 %v42
    %68 = vmatpush1.msra.mxu0 %v41
    %69 = vmatprep.subr.mxu0 %v44
    %70 = vmatpush1.msra.mxu0 %v43
    %71 = vmatprep.subr.mxu0 %v46
    %72 = vmatpush1.msra.mxu0 %v45
    %73 = vmatprep.subr.mxu0 %v48
    %74 = vmatpush1.msra.mxu0 %v47
    %75 = vmatprep.subr.mxu0 0.0
    %76 = vmatpush1.msra.mxu0 0.0
    %77 = vmatprep.subr.mxu0 0.0
    %78 = vmatpush1.msra.mxu0 0.0
    %79 = vmatprep.subr.mxu0 0.0
    %80 = vmatpush1.msra.mxu0 0.0
    %81 = vmatprep.subr.mxu0 0.0
    %82 = vmatpush1.msra.mxu0 0.0
    %83 = vmatprep.subr.mxu0 0.0
    %84 = vmatpush1.msra.mxu0 0.0
    %85 = vmatprep.subr.mxu0 0.0
    %86 = vmatpush1.msra.mxu0 0.0
    %87 = vmatprep.subr.mxu0 0.0
    %88 = vmatpush1.msra.mxu0 0.0
    %89 = vmatprep.subr.mxu0 0.0
    %90 = vmatpush1.msra.mxu0 0.0
    %91 = vmatprep.subr.mxu0 0.0
    %92 = vmatpush1.msra.mxu0 0.0
    %93 = vmatprep.subr.mxu0 0.0
    %94 = vmatpush1.msra.mxu0 0.0
    %95 = vmatprep.subr.mxu0 0.0
    %96 = vmatpush1.msra.mxu0 0.0
    %97 = vmatprep.subr.mxu0 0.0
    %98 = vmatpush1.msra.mxu0 0.0
    %99 = vmatprep.subr.mxu0 0.0
    %100 = vmatpush1.msra.mxu0 0.0
    %101 = vmatprep.subr.mxu0 0.0
    %102 = vmatpush1.msra.mxu0 0.0
    %103 = vmatprep.subr.mxu0 0.0
    %104 = vmatpush1.msra.mxu0 0.0
    %105 = vmatprep.subr.mxu0 0.0
    %106 = vmatpush1.msra.mxu0 0.0
    %107 = vmatprep.subr.mxu0 0.0
    %108 = vmatpush1.msra.mxu0 0.0
    %109 = vmatprep.subr.mxu0 0.0
    %110 = vmatpush1.msra.mxu0 0.0
    %111 = vmatprep.subr.mxu0 0.0
    %112 = vmatpush1.msra.mxu0 0.0
    %113 = vmatprep.subr.mxu0 0.0
    %114 = vmatpush1.msra.mxu0 0.0
    %115 = vmatprep.subr.mxu0 0.0
    %116 = vmatpush1.msra.mxu0 0.0
    %117 = vmatprep.subr.mxu0 0.0
    %118 = vmatpush1.msra.mxu0 0.0
    %119 = vmatprep.subr.mxu0 0.0
    %120 = vmatpush1.msra.mxu0 0.0
    %121 = vmatprep.subr.mxu0 0.0
    %122 = vmatpush1.msra.mxu0 0.0
    %123 = vmatprep.subr.mxu0 0.0
    %124 = vmatpush1.msra.mxu0 0.0
    %125 = vmatprep.subr.mxu0 0.0
    %126 = vmatpush1.msra.mxu0 0.0
    %127 = vmatprep.subr.mxu0 0.0
    %128 = vmatpush1.msra.mxu0 0.0
    %129 = vmatprep.subr.mxu0 0.0
    %130 = vmatpush1.msra.mxu0 0.0
    %131 = vmatprep.mubr.f32.mxu0 0.0
    %132 = vmatmul.mubr.f32.gmra.mrb[0].mxu0 %v65
    %v133 = vpop.f32.mrb[0].mxu0
    %v134 = vadd.f32 %v56, %v133
    %v135 = vpop.f32.mrb[0].mxu0
    %v136 = vadd.f32 %v60, %v135
    %137 = vdwg.mxu0
    %v138 = vmul.f32 %v40, 0.95
    %v141 = vcombine.low %v134, %v136
    %v143 = vunpack.c.l.s4 1983009808
    %v144 = vunpack.c.0.s8 %v143
    %v145 = vlaneseq
    %v146 = vshrl.u32 %v145, 7
    %v147 = vsub.s32 %v144, %v146
    %v148 = vrot.slane %v141, %v147
    %v150 = vadd.f32 %v138, %v148
    %vm151 = vcmp.gt.f32.partialorder %v40, 1.0
    %v152 = vsel %vm151, 1.0, 0.0
    %v153 = vsub.f32 %v150, %v152
    %vm154 = vcmp.gt.f32.partialorder %v153, 1.0
    %v156 = vlaneseq
    %v157 = vshrl.u32 %v156, 7
    %v158 = vsub.s32 0, %v157
    %v159 = vrot.slane %v50, %v158
    %v160 = vlaneseq
    %v161 = vshrl.u32 %v160, 7
    %v162 = vsub.s32 1, %v161
    %v163 = vrot.slane %v50, %v162
    %v164 = vcombine.low %v159, %v163
    %v166 = vunpack.c.l.s4 1983009808
    %v167 = vunpack.c.0.s8 %v166
    %v168 = vlaneseq
    %v169 = vshrl.u32 %v168, 7
    %v170 = vsub.s32 %v167, %v169
    %v171 = vrot.slane %v164, %v170
    %v173 = vsel %vm154, %v171, 0.0
    %v176 = vunpack.c.l.s4 1983009808
    %v177 = vunpack.c.0.s8 %v176
    %v178 = vlaneseq
    %v179 = vshrl.u32 %v178, 7
    %v180 = vsub.s32 %v177, %v179
    %v181 = vrot.slane %v173, %v180
    %v182 = vcombine.high %v181, %v181
    %vm185 = vcmask 1041408
    %v186 = vsel %vm185, %v181, 0.0
    %v187 = vsel %vm185, %v182, 0.0
    %v188 = vadd.f32 %v186, %v187
    %189 = vadd.xlane.f32.xlu0 %v188
    %v190 = vpop.xlane.xlu0 %189
    %v191 = vstv %s51
    %v192 = vadd.f32 %v190, %v191
    %vm193 = vcmp.gt.f32.partialorder %v192, 1.0
    %v194 = vsel %vm193, 1.0, 0.0
    %v195 = vlaneseq
    %v196 = vand.u32 %v195, 127
    %vm197 = vcmp.eq.s32.totalorder %v196, 0
    %vm198 = vcmp.eq.s32.totalorder %v196, 1
    %v199 = vsel %vm198, %v192, 0.0
    %v200 = vsel %vm197, %v194, %v199
    %201 = vst [vmem:[#allocation6] sm:$0x3] %v200
    // Predicated region
    $region30: #{tpu_custom_call.1} parent=1 // pred_check
      _
    $region31: #{tpu_custom_call.1} parent=1 // pred_check_branch
      %203 = sbr.rel (0) target = $region33
    $region32: #{tpu_custom_call.1} parent=1 // pred_region
      %s205 = ssub.s32 32, 32
      %206 = vsyncadd [#allocation5], %s205
      %s208 = sshll.u32 [#allocation6], 4
      %s209 = int_to_ptr.vmem [resolvable:$true] %s208
      %211 = dma.vmem_to_hbm [thread:$0]  %s209, 32, %s6, [#allocation5]
    $region33: #{tpu_custom_call.1} parent=1 // pred_fallthru
      _
    // Predicated region
    $region34: #{tpu_custom_call.1} parent=1 // pred_check
      _
    $region35: #{tpu_custom_call.1} parent=1 // pred_check_branch
      %213 = sbr.rel (0) target = $region37
    $region36: #{tpu_custom_call.1} parent=1 // pred_region
      %214 = dma.done [#allocation5], 32
    $region37: #{tpu_custom_call.1} parent=1 // pred_fallthru
      _
    %215 = vsyncpa [#allocation4], 1
    %216 = vsyncpa [#allocation5], 1

</llo_original>
